<compile_context>
chip_gen: v6e
topology: v6e:2x2x1
jax: 0.10.0
libtpu: 0.0.40
codegen_flags: <defaults>
</compile_context>

<pallas_src>
import functools

import jax
import jax.numpy as jnp
from jax.experimental import pallas as pl
from jax.experimental.pallas import tpu as pltpu


OUT_PAD = 128  # lane-dense output width: col 0 = value, cols 1..A = policy


def _round_up(x, m):
    return -(-x // m) * m


def actor_critic_kernel(x_ref, w1_ref, w2_ref, w3_ref, out_ref, *, num_actions):
    """Fused critic+actor MLP on one batch tile.

    x_ref  : (Bt, S+1)        states with trailing ones-column (bias fold)
    w1_ref : (S+1, 2*H1+1)    [critic | actor] layer-1 weights+bias (+carry col)
    w2_ref : (2*H1+1, 2*H2+1) block-diagonal layer-2 weights+bias (+carry col)
    w3_ref : (2*H2+1, OUT_PAD) layer-3 weights+bias packed into a 128-lane slab
    out_ref: (Bt, OUT_PAD)    col 0 = value, cols 1..A = policy, rest 0
    """
    x = x_ref[...]
    h1 = jnp.maximum(
        jnp.dot(x, w1_ref[...], preferred_element_type=jnp.float32), 0.0)
    h2 = jnp.maximum(
        jnp.dot(h1, w2_ref[...], preferred_element_type=jnp.float32), 0.0)
    logits = jnp.dot(h2, w3_ref[...], preferred_element_type=jnp.float32)

    # Masked, numerically-stable softmax over the policy columns only.
    col = jax.lax.broadcasted_iota(jnp.int32, logits.shape, 1)
    pol_mask = (col >= 1) & (col <= num_actions)
    masked = jnp.where(pol_mask, logits, -jnp.inf)
    m = jnp.max(masked, axis=1, keepdims=True)
    e = jnp.where(pol_mask, jnp.exp(logits - m), 0.0)
    denom = jnp.sum(e, axis=1, keepdims=True)
    # Exact divide: the approximate EUP reciprocal's relative error rescales
    # every probability identically, breaking sum(policy) == 1 at ~1e-3 level.
    policy = e / denom

    # Single lane-dense store: col 0 keeps the critic value, cols > A are 0.
    out_ref[...] = jnp.where(col == 0, logits, policy)


def pack_params(p, num_actions, out_pad=OUT_PAD):
    """Pack 12 per-layer tensors into 3 fused weight matrices (bias folded)."""
    cw1, cb1, cw2, cb2, cw3, cb3 = (p["cw1"], p["cb1"], p["cw2"], p["cb2"],
                                    p["cw3"], p["cb3"])
    aw1, ab1, aw2, ab2, aw3, ab3 = (p["aw1"], p["ab1"], p["aw2"], p["ab2"],
                                    p["aw3"], p["ab3"])
    S, H1 = cw1.shape
    H2 = cw2.shape[1]
    A = num_actions
    assert 1 + A <= out_pad

    w1 = jnp.zeros((S + 1, 2 * H1 + 1), jnp.float32)
    w1 = w1.at[:S, :H1].set(cw1).at[:S, H1:2 * H1].set(aw1)
    w1 = w1.at[S, :H1].set(cb1[0]).at[S, H1:2 * H1].set(ab1[0])
    w1 = w1.at[S, 2 * H1].set(1.0)                 # carry ones column forward

    w2 = jnp.zeros((2 * H1 + 1, 2 * H2 + 1), jnp.float32)
    w2 = w2.at[:H1, :H2].set(cw2).at[H1:2 * H1, H2:2 * H2].set(aw2)
    w2 = w2.at[2 * H1, :H2].set(cb2[0]).at[2 * H1, H2:2 * H2].set(ab2[0])
    w2 = w2.at[2 * H1, 2 * H2].set(1.0)            # carry ones column forward

    w3 = jnp.zeros((2 * H2 + 1, out_pad), jnp.float32)
    w3 = w3.at[:H2, 0].set(cw3[:, 0])              # critic -> value col 0
    w3 = w3.at[H2:2 * H2, 1:1 + A].set(aw3)        # actor  -> cols 1..A
    w3 = w3.at[2 * H2, 0].set(cb3[0, 0])
    w3 = w3.at[2 * H2, 1:1 + A].set(ab3[0])
    return w1, w2, w3


def actor_critic_forward(state, packed, num_actions):
    """state: (B, S) f32. packed: (w1, w2, w3) from pack_params."""
    w1, w2, w3 = packed
    B, _ = state.shape
    out_pad = w3.shape[1]

    # Fold biases into the matmuls: append a ones column to the states.
    x = jnp.concatenate(
        [state.astype(jnp.float32), jnp.ones((B, 1), jnp.float32)], axis=1)

    # Pad the batch up to a sublane/tile multiple.
    b_tile = 128 if B >= 128 else _round_up(max(B, 1), 8)
    b_pad = _round_up(B, b_tile)
    if b_pad != B:
        x = jnp.pad(x, ((0, b_pad - B), (0, 0)))
    num_tiles = b_pad // b_tile

    kernel = functools.partial(actor_critic_kernel, num_actions=num_actions)
    out_shape = jax.ShapeDtypeStruct((b_pad, out_pad), jnp.float32)

    if num_tiles == 1:
        # Single tile: no grid scaffolding, whole arrays resident in VMEM.
        out = pl.pallas_call(
            kernel,
            out_shape=out_shape,
            in_specs=[pl.BlockSpec(memory_space=pltpu.MemorySpace.VMEM)
                      for _ in range(4)],
            out_specs=pl.BlockSpec(memory_space=pltpu.MemorySpace.VMEM),
        )(x, w1, w2, w3)
    else:
        # Batched: tile the batch; "parallel" lets megacore split it across TCs.
        out = pl.pallas_call(
            kernel,
            grid=(num_tiles,),
            out_shape=out_shape,
            in_specs=[
                pl.BlockSpec((b_tile, x.shape[1]), lambda i: (i, 0)),
                pl.BlockSpec(w1.shape, lambda i: (0, 0)),
                pl.BlockSpec(w2.shape, lambda i: (0, 0)),
                pl.BlockSpec(w3.shape, lambda i: (0, 0)),
            ],
            out_specs=pl.BlockSpec((b_tile, out_pad), lambda i: (i, 0)),
            compiler_params=pltpu.CompilerParams(
                dimension_semantics=("parallel",)),
        )(x, w1, w2, w3)

    value = out[:B, 0:1]
    policy = out[:B, 1:1 + num_actions]
    return value, policy


def init_params(key, state_space, layers, action_space):
    """Deterministic synthetic init. Weights stored as (in, out)."""
    ks = jax.random.split(key, 12)

    def w(k, i, o):
        return (jax.random.normal(k, (i, o), jnp.float32) / jnp.sqrt(i))

    def b(k, o):
        return 0.01 * jax.random.normal(k, (1, o), jnp.float32)

    h1, h2 = layers
    return {
        "cw1": w(ks[0], state_space, h1), "cb1": b(ks[1], h1),
        "cw2": w(ks[2], h1, h2),          "cb2": b(ks[3], h2),
        "cw3": w(ks[4], h2, 1),           "cb3": b(ks[5], 1),
        "aw1": w(ks[6], state_space, h1), "ab1": b(ks[7], h1),
        "aw2": w(ks[8], h1, h2),          "ab2": b(ks[9], h2),
        "aw3": w(ks[10], h2, action_space), "ab3": b(ks[11], action_space),
    }


def reference_forward(state, p):
    """Pure-JAX reference mirroring the PyTorch module."""
    v = jax.nn.relu(state @ p["cw1"] + p["cb1"])
    v = jax.nn.relu(v @ p["cw2"] + p["cb2"])
    v = v @ p["cw3"] + p["cb3"]
    a = jax.nn.relu(state @ p["aw1"] + p["ab1"])
    a = jax.nn.relu(a @ p["aw2"] + p["ab2"])
    a = jax.nn.softmax(a @ p["aw3"] + p["ab3"], axis=1)
    return v, a


if __name__ == "__main__":
    key = jax.random.PRNGKey(0)
    state_space, layers, action_space = 16, [32, 32], 8

    k_state, k_params = jax.random.split(key)
    params = init_params(k_params, state_space, layers, action_space)
    packed = pack_params(params, action_space)

    # --- batched path (amortizes launch/DMA overhead; grid split over TCs) ---
    batch = 256
    states = jax.random.normal(k_state, (batch, state_space), jnp.float32)
    value, policy = jax.block_until_ready(
        actor_critic_forward(states, packed, action_space))

    v_ref, p_ref = reference_forward(states, params)
    assert value.shape == (batch, 1) and policy.shape == (batch, action_space)
    assert jnp.allclose(value, v_ref, atol=1e-4, rtol=1e-4)
    assert jnp.allclose(policy, p_ref, atol=2e-3, rtol=2e-3)
    assert jnp.allclose(jnp.sum(policy, axis=1), 1.0, atol=2e-3)

    # --- single-state path (mirrors the PyTorch forward's unsqueeze(0)) ---
    v1, p1 = jax.block_until_ready(
        actor_critic_forward(states[:1], packed, action_space))
    assert v1.shape == (1, 1) and p1.shape == (1, action_space)
    assert jnp.allclose(v1, v_ref[:1], atol=1e-4, rtol=1e-4)
    assert jnp.allclose(p1, p_ref[:1], atol=2e-3, rtol=2e-3)

    print("KERNEL_OK")
</pallas_src>

<mosaic_0001>
module attributes {stable_mosaic.version = 11 : i64} {
  func.func @actor_critic_kernel(%arg0: i32, %arg1: memref<128x17xf32, #tpu.memory_space<vmem>>, %arg2: memref<17x65xf32, #tpu.memory_space<vmem>>, %arg3: memref<65x65xf32, #tpu.memory_space<vmem>>, %arg4: memref<65x128xf32, #tpu.memory_space<vmem>>, %arg5: memref<128x128xf32, #tpu.memory_space<vmem>>) attributes {dimension_semantics = [#tpu.dimension_semantics<parallel>], iteration_bounds = array<i64: 2>, scalar_prefetch = 0 : i64, scratch_operands = 0 : i64, tpu.core_type = #tpu.core_type<tc>, window_params = [{transform_indices = @transform_0, window_bounds = array<i64: 128, 17>}, {pipeline_mode = #tpu.pipeline_mode<synchronous>, transform_indices = @transform_1, window_bounds = array<i64: 17, 65>}, {pipeline_mode = #tpu.pipeline_mode<synchronous>, transform_indices = @transform_2, window_bounds = array<i64: 65, 65>}, {pipeline_mode = #tpu.pipeline_mode<synchronous>, transform_indices = @transform_3, window_bounds = array<i64: 65, 128>}, {transform_indices = @transform_4, window_bounds = array<i64: 128, 128>}]} {
    %c0 = arith.constant 0 : index
    %c0_0 = arith.constant 0 : index
    %0 = vector.load %arg1[%c0, %c0_0] : memref<128x17xf32, #tpu.memory_space<vmem>>, vector<128x17xf32>
    %c0_1 = arith.constant 0 : index
    %c0_2 = arith.constant 0 : index
    %1 = vector.load %arg2[%c0_1, %c0_2] : memref<17x65xf32, #tpu.memory_space<vmem>>, vector<17x65xf32>
    %cst = arith.constant dense<0.000000e+00> : vector<128x65xf32>
    %2 = tpu.matmul %0, %1, %cst {dimension_numbers = #tpu.dot_dimension_numbers<[1], [0], [0], [1], [0, 0, 1, 1], [], []>} : vector<128x17xf32>, vector<17x65xf32>, vector<128x65xf32> -> vector<128x65xf32>
    %cst_3 = arith.constant 0.000000e+00 : f32
    %3 = vector.broadcast %cst_3 : f32 to vector<128x65xf32>
    %4 = arith.maximumf %2, %3 : vector<128x65xf32>
    %c0_4 = arith.constant 0 : index
    %c0_5 = arith.constant 0 : index
    %5 = vector.load %arg3[%c0_4, %c0_5] : memref<65x65xf32, #tpu.memory_space<vmem>>, vector<65x65xf32>
    %cst_6 = arith.constant dense<0.000000e+00> : vector<128x65xf32>
    %6 = tpu.matmul %4, %5, %cst_6 {dimension_numbers = #tpu.dot_dimension_numbers<[1], [0], [0], [1], [0, 0, 1, 1], [], []>} : vector<128x65xf32>, vector<65x65xf32>, vector<128x65xf32> -> vector<128x65xf32>
    %cst_7 = arith.constant 0.000000e+00 : f32
    %7 = vector.broadcast %cst_7 : f32 to vector<128x65xf32>
    %8 = arith.maximumf %6, %7 : vector<128x65xf32>
    %c0_8 = arith.constant 0 : index
    %c0_9 = arith.constant 0 : index
    %9 = vector.load %arg4[%c0_8, %c0_9] : memref<65x128xf32, #tpu.memory_space<vmem>>, vector<65x128xf32>
    %cst_10 = arith.constant dense<0.000000e+00> : vector<128x128xf32>
    %10 = tpu.matmul %8, %9, %cst_10 {dimension_numbers = #tpu.dot_dimension_numbers<[1], [0], [0], [1], [0, 0, 1, 1], [], []>} : vector<128x65xf32>, vector<65x128xf32>, vector<128x128xf32> -> vector<128x128xf32>
    %11 = tpu.iota {dimensions = array<i32: 1>} : vector<128x128xi32>
    %c1_i32 = arith.constant 1 : i32
    %12 = vector.broadcast %c1_i32 : i32 to vector<128x128xi32>
    %13 = arith.cmpi sge, %11, %12 : vector<128x128xi32>
    %c8_i32 = arith.constant 8 : i32
    %14 = vector.broadcast %c8_i32 : i32 to vector<128x128xi32>
    %15 = arith.cmpi sle, %11, %14 : vector<128x128xi32>
    %16 = arith.andi %13, %15 : vector<128x128xi1>
    %cst_11 = arith.constant 0xFF800000 : f32
    %17 = vector.broadcast %cst_11 : f32 to vector<128x128xf32>
    %18 = arith.select %16, %10, %17 : vector<128x128xi1>, vector<128x128xf32>
    %cst_12 = arith.constant dense<0xFF800000> : vector<128xf32>
    %19 = vector.multi_reduction <maximumf>, %18, %cst_12 [1] : vector<128x128xf32> to vector<128xf32>
    %20 = vector.shape_cast %19 : vector<128xf32> to vector<128x1xf32>
    %21 = vector.broadcast %20 : vector<128x1xf32> to vector<128x128xf32>
    %22 = arith.subf %10, %21 : vector<128x128xf32>
    %23 = math.exp %22 : vector<128x128xf32>
    %cst_13 = arith.constant 0.000000e+00 : f32
    %24 = vector.broadcast %cst_13 : f32 to vector<128x128xf32>
    %25 = arith.select %16, %23, %24 : vector<128x128xi1>, vector<128x128xf32>
    %cst_14 = arith.constant dense<0.000000e+00> : vector<128xf32>
    %26 = vector.multi_reduction <add>, %25, %cst_14 [1] : vector<128x128xf32> to vector<128xf32>
    %27 = vector.shape_cast %26 : vector<128xf32> to vector<128x1xf32>
    %28 = vector.broadcast %27 : vector<128x1xf32> to vector<128x128xf32>
    %29 = arith.divf %25, %28 : vector<128x128xf32>
    %c0_i32 = arith.constant 0 : i32
    %30 = vector.broadcast %c0_i32 : i32 to vector<128x128xi32>
    %31 = arith.cmpi eq, %11, %30 : vector<128x128xi32>
    %32 = arith.select %31, %10, %29 : vector<128x128xi1>, vector<128x128xf32>
    %c0_15 = arith.constant 0 : index
    %c0_16 = arith.constant 0 : index
    %33 = vector.load %arg5[%c0_15, %c0_16] : memref<128x128xf32, #tpu.memory_space<vmem>>, vector<128x128xf32>
    tpu.vector_store %arg5[%c0_15, %c0_16], %32 {strides = array<i32>} : memref<128x128xf32, #tpu.memory_space<vmem>>, vector<128x128xf32>,
    return
  }
  func.func @transform_0(%arg0: i32) -> (i32, i32) {
    %c0_i32 = arith.constant 0 : i32
    %c0_i32_0 = arith.constant 0 : i32
    return %arg0, %c0_i32 : i32, i32
  }
  func.func @transform_1(%arg0: i32) -> (i32, i32) {
    %c0_i32 = arith.constant 0 : i32
    %c0_i32_0 = arith.constant 0 : i32
    %c0_i32_1 = arith.constant 0 : i32
    return %c0_i32, %c0_i32_0 : i32, i32
  }
  func.func @transform_2(%arg0: i32) -> (i32, i32) {
    %c0_i32 = arith.constant 0 : i32
    %c0_i32_0 = arith.constant 0 : i32
    %c0_i32_1 = arith.constant 0 : i32
    return %c0_i32, %c0_i32_0 : i32, i32
  }
  func.func @transform_3(%arg0: i32) -> (i32, i32) {
    %c0_i32 = arith.constant 0 : i32
    %c0_i32_0 = arith.constant 0 : i32
    %c0_i32_1 = arith.constant 0 : i32
    return %c0_i32, %c0_i32_0 : i32, i32
  }
  func.func @transform_4(%arg0: i32) -> (i32, i32) {
    %c0_i32 = arith.constant 0 : i32
    %c0_i32_0 = arith.constant 0 : i32
    return %arg0, %c0_i32 : i32, i32
  }
}

</mosaic_0001>

<llo_original>
// kernel: tpu_custom_call.1
$region0: #{tpu_custom_call.1}
  #allocation0 [shape = 'u32[]', space=smem, size = 0x4, offset = 0x4, fixed_abs, tag = 'smem constant byte address 0x4 - core index']
  #allocation1 [shape = 'u32[144,128]{1,0:T(1,128)}', space=vmem, size = 0x12000, scoped, tag = 'internal scratch']
  %s0 = inlined_call_operand.vmem [shape: f32[256,17], index: 0, kind: input, shape index: {}]
  %s1 = inlined_call_operand.vmem [shape: f32[17,65], index: 1, kind: input, shape index: {}]
  %s2 = inlined_call_operand.vmem [shape: f32[65,65], index: 2, kind: input, shape index: {}]
  %s3 = inlined_call_operand.vmem [shape: f32[65,128], index: 3, kind: input, shape index: {}]
  %s4 = inlined_call_operand.hbm [shape: f32[256,128], index: 4, kind: output, shape index: {}]
  %s5 = sld [smem:[#allocation0]]
  $region49: #{tpu_custom_call.1} parent=0
    _
  %s7 = ssub.s32 1, %s5
  %s8 = scalar_select 0, %s7, %s5
  $region1: #{tpu_custom_call.1} parent=0
    #allocation2 [shape = 'u8[131072]{0}', space=vmem, size = 0x20000, scoped, tag = 'output window, operand 0']
    #allocation3 [shape = 's32[2]{0}', space=sflag, size = 0x8, scoped, tag = 'scoped memory for tpu_custom_call.1']
    %9 = vsyncpa [#allocation3], 0
    %s10 = scalar_lea.sflag [#allocation3], 1
    %11 = vsyncpa %s10, 0
    loop: start=0, step=1, limit=4
    $region2: #{tpu_custom_call.1} parent=1 // loop_pre_header
      _
    $region3: #{tpu_custom_call.1} parent=1 // loop_header
      %s13 = sphi 0, %s17
      %p14 = scmp.ge.s32.totalorder %s13, 4
      %s23 = sphi 0, %s25
      %s26 = sphi 0, %s23
      %s27 = sphi 0, %s26
      %s43 = sphi 0, %s27
      %s47 = sphi 0, %s47
      %s49 = sphi 0, %s47
      %s50 = sphi 0, %s49
      %s64 = sphi 0, %s50
      %s68 = sphi 0, %s68
      %s70 = sphi 0, %s68
      %s71 = sphi 0, %s70
      %s85 = sphi 0, %s71
      %s89 = sphi 0, %s89
      %s91 = sphi 0, %s89
      %s92 = sphi 0, %s91
      %s106 = sphi 0, %s92
      %s112 = sphi 0, %s114
      %s115 = sphi 0, %s112
      %s116 = sphi 0, %s115
      %s132 = sphi 0, %s116
    $region4: #{tpu_custom_call.1} parent=1 // loop_header_branch
      %16 = sbr.rel (%p14) target = $region8
    $region5: #{tpu_custom_call.1} parent=1 // loop_body
      %s18 = ssub.s32 %s13, 1
      %s19 = ssub.s32 %s13, 2
      %s20 = sadd.s32 %s13, 1
      %s21 = ssub.s32 %s13, %s20
      %p22 = scmp.eq.s32.totalorder %s21, 0
      %s24 = sadd.s32 %s23, 1
      %s25 = scalar_select %p22, %s23, %s24
      %p28 = pneg %p22
      %p29 = scmp.eq.s32.totalorder %s13, 1
      %p30 = por %p28, %p29
      %p31 = scmp.ne.s32.totalorder %s23, %s26
      %p32 = scmp.eq.s32.totalorder %s13, 0
      %p33 = por %p31, %p32
      %p34 = scmp.ne.s32.totalorder %s23, %s26
      %p35 = scmp.eq.s32.totalorder %s18, 1
      %p36 = por %p34, %p35
      %p37 = scmp.ne.s32.totalorder %s26, %s27
      %p38 = scmp.eq.s32.totalorder %s18, 0
      %p39 = por %p37, %p38
      %p40 = scmp.ne.s32.totalorder %s26, %s27
      %p41 = scmp.eq.s32.totalorder %s19, 1
      %p42 = por %p40, %p41
      %p44 = scmp.ne.s32.totalorder %s27, %s43
      %p45 = scmp.eq.s32.totalorder %s19, 0
      %p46 = por %p44, %p45
      %s48 = sadd.s32 %s47, 1
      %p51 = scmp.eq.s32.totalorder %s13, 1
      %p52 = scmp.ne.s32.totalorder %s47, %s49
      %p53 = scmp.eq.s32.totalorder %s13, 0
      %p54 = por %p52, %p53
      %p55 = scmp.ne.s32.totalorder %s47, %s49
      %p56 = scmp.eq.s32.totalorder %s18, 1
      %p57 = por %p55, %p56
      %p58 = scmp.ne.s32.totalorder %s49, %s50
      %p59 = scmp.eq.s32.totalorder %s18, 0
      %p60 = por %p58, %p59
      %p61 = scmp.ne.s32.totalorder %s49, %s50
      %p62 = scmp.eq.s32.totalorder %s19, 1
      %p63 = por %p61, %p62
      %p65 = scmp.ne.s32.totalorder %s50, %s64
      %p66 = scmp.eq.s32.totalorder %s19, 0
      %p67 = por %p65, %p66
      %s69 = sadd.s32 %s68, 1
      %p72 = scmp.eq.s32.totalorder %s13, 1
      %p73 = scmp.ne.s32.totalorder %s68, %s70
      %p74 = scmp.eq.s32.totalorder %s13, 0
      %p75 = por %p73, %p74
      %p76 = scmp.ne.s32.totalorder %s68, %s70
      %p77 = scmp.eq.s32.totalorder %s18, 1
      %p78 = por %p76, %p77
      %p79 = scmp.ne.s32.totalorder %s70, %s71
      %p80 = scmp.eq.s32.totalorder %s18, 0
      %p81 = por %p79, %p80
      %p82 = scmp.ne.s32.totalorder %s70, %s71
      %p83 = scmp.eq.s32.totalorder %s19, 1
      %p84 = por %p82, %p83
      %p86 = scmp.ne.s32.totalorder %s71, %s85
      %p87 = scmp.eq.s32.totalorder %s19, 0
      %p88 = por %p86, %p87
      %s90 = sadd.s32 %s89, 1
      %p93 = scmp.eq.s32.totalorder %s13, 1
      %p94 = scmp.ne.s32.totalorder %s89, %s91
      %p95 = scmp.eq.s32.totalorder %s13, 0
      %p96 = por %p94, %p95
      %p97 = scmp.ne.s32.totalorder %s89, %s91
      %p98 = scmp.eq.s32.totalorder %s18, 1
      %p99 = por %p97, %p98
      %p100 = scmp.ne.s32.totalorder %s91, %s92
      %p101 = scmp.eq.s32.totalorder %s18, 0
      %p102 = por %p100, %p101
      %p103 = scmp.ne.s32.totalorder %s91, %s92
      %p104 = scmp.eq.s32.totalorder %s19, 1
      %p105 = por %p103, %p104
      %p107 = scmp.ne.s32.totalorder %s92, %s106
      %p108 = scmp.eq.s32.totalorder %s19, 0
      %p109 = por %p107, %p108
      %s110 = ssub.s32 %s13, %s20
      %p111 = scmp.eq.s32.totalorder %s110, 0
      %s113 = sadd.s32 %s112, 1
      %s114 = scalar_select %p111, %s112, %s113
      %p117 = pneg %p111
      %p118 = scmp.eq.s32.totalorder %s13, 1
      %p119 = por %p117, %p118
      %p120 = scmp.ne.s32.totalorder %s112, %s115
      %p121 = scmp.eq.s32.totalorder %s13, 0
      %p122 = por %p120, %p121
      %p123 = scmp.ne.s32.totalorder %s112, %s115
      %p124 = scmp.eq.s32.totalorder %s18, 1
      %p125 = por %p123, %p124
      %p126 = scmp.ne.s32.totalorder %s115, %s116
      %p127 = scmp.eq.s32.totalorder %s18, 0
      %p128 = por %p126, %p127
      %p129 = scmp.ne.s32.totalorder %s115, %s116
      %p130 = scmp.eq.s32.totalorder %s19, 1
      %p131 = por %p129, %p130
      %p133 = scmp.ne.s32.totalorder %s116, %s132
      %p134 = scmp.eq.s32.totalorder %s19, 0
      %p135 = por %p133, %p134
      %p136 = scmp.le.s32.totalorder 1, %s13
      %p137 = scmp.lt.s32.totalorder %s13, 3
      %p138 = pnand %p136, %p137
      %p139 = pneg %p138
      // Predicated region
      $region9: #{tpu_custom_call.1} parent=5 // pred_check
        _
      $region10: #{tpu_custom_call.1} parent=5 // pred_check_branch
        %141 = sbr.rel (%p138) target = $region12
      $region11: #{tpu_custom_call.1} parent=5 // pred_region
        %s142 = ssub.s32 %s13, 1
        // Predicated region
        $region13: #{tpu_custom_call.1} parent=11 // pred_check
          %p143 = pneg %p60
        $region14: #{tpu_custom_call.1} parent=11 // pred_check_branch
          %145 = sbr.rel (%p143) target = $region16
        $region15: #{tpu_custom_call.1} parent=11 // pred_region
          _
        $region16: #{tpu_custom_call.1} parent=11 // pred_fallthru
          _
        // Predicated region
        $region17: #{tpu_custom_call.1} parent=11 // pred_check
          %p146 = pneg %p81
        $region18: #{tpu_custom_call.1} parent=11 // pred_check_branch
          %148 = sbr.rel (%p146) target = $region20
        $region19: #{tpu_custom_call.1} parent=11 // pred_region
          _
        $region20: #{tpu_custom_call.1} parent=11 // pred_fallthru
          _
        // Predicated region
        $region21: #{tpu_custom_call.1} parent=11 // pred_check
          %p149 = pneg %p102
        $region22: #{tpu_custom_call.1} parent=11 // pred_check_branch
          %151 = sbr.rel (%p149) target = $region24
        $region23: #{tpu_custom_call.1} parent=11 // pred_region
          _
        $region24: #{tpu_custom_call.1} parent=11 // pred_fallthru
          _
      $region12: #{tpu_custom_call.1} parent=5 // pred_fallthru
        _
      %p152 = scmp.lt.s32.totalorder %s13, 2
      // Predicated region
      $region25: #{tpu_custom_call.1} parent=5 // pred_check
        %p153 = pneg %p152
      $region26: #{tpu_custom_call.1} parent=5 // pred_check_branch
        %155 = sbr.rel (%p153) target = $region28
      $region27: #{tpu_custom_call.1} parent=5 // pred_region
        // Predicated region
        $region29: #{tpu_custom_call.1} parent=27 // pred_check
          %p156 = pneg %p33
        $region30: #{tpu_custom_call.1} parent=27 // pred_check_branch
          %158 = sbr.rel (%p156) target = $region32
        $region31: #{tpu_custom_call.1} parent=27 // pred_region
          %s159 = smul.u32 16, %s13
          %p160 = scmp.lt.s32.totalorder %s159, 31
          %s161 = scalar_select %p160, %s159, 31
          %s162 = smul.addr %s161, 8
          %s163 = scalar_lea.vmem %s0, %s162
          %s164 = smul.u32 16, %s13
        $region32: #{tpu_custom_call.1} parent=27 // pred_fallthru
          _
      $region28: #{tpu_custom_call.1} parent=5 // pred_fallthru
        _
      %p165 = scmp.le.s32.totalorder 1, %s13
      %p166 = scmp.lt.s32.totalorder %s13, 3
      %p167 = pnand %p165, %p166
      %p168 = pneg %p167
      // Predicated region
      $region33: #{tpu_custom_call.1} parent=5 // pred_check
        _
      $region34: #{tpu_custom_call.1} parent=5 // pred_check_branch
        %170 = sbr.rel (%p167) target = $region36
      $region35: #{tpu_custom_call.1} parent=5 // pred_region
        %s171 = ssub.s32 %s13, 1
        %s172 = smul.u32 16, %s18
        %p173 = scmp.lt.s32.totalorder %s172, 31
        %s174 = scalar_select %p173, %s172, 31
        %s175 = smul.addr %s174, 8
        %s176 = scalar_lea.vmem %s0, %s175
        %p177 = pneg %p39
        %p178 = pneg %p36
        %p179 = pneg %p60
        %p180 = pneg %p57
        %p181 = pneg %p81
        %p182 = pneg %p78
        %p183 = pneg %p102
        %p184 = pneg %p99
        %p185 = pneg %p128
        %p186 = pneg %p125
        %s187 = sand.u32 %s115, 1
        %s188 = scalar_lea.sflag [#allocation3], %s187
        %s189 = sand.u32 %s115, 1
        %s190 = smul.addr %s189, 128
        %s191 = scalar_lea.vmem [#allocation2], %s190
        %s192 = smul.u32 16, %s18
        %p193 = scmp.lt.s32.totalorder %s192, 31
        %s194 = scalar_select %p193, %s192, 31
        %s195 = smul.addr %s194, 8
        %s196 = scalar_lea.vmem %s0, %s195
        %s197 = smul.u32 16, %s18
        %s198 = smul.u32 16, %s18
        %v199 = vld [vmem:[%s196] sm:$0xff]
        %v200 = vld [vmem:[%s196 + $0x8] sm:$0xff]
        %v201 = vld [vmem:[%s196 + $0x10] sm:$0xff]
        %v202 = vld [vmem:[%s196 + $0x18] sm:$0xff]
        %v203 = vld [vmem:[%s196 + $0x20] sm:$0xff]
        %v204 = vld [vmem:[%s196 + $0x28] sm:$0xff]
        %v205 = vld [vmem:[%s196 + $0x30] sm:$0xff]
        %v206 = vld [vmem:[%s196 + $0x38] sm:$0xff]
        %v207 = vld [vmem:[%s196 + $0x40] sm:$0xff]
        %v208 = vld [vmem:[%s196 + $0x48] sm:$0xff]
        %v209 = vld [vmem:[%s196 + $0x50] sm:$0xff]
        %v210 = vld [vmem:[%s196 + $0x58] sm:$0xff]
        %v211 = vld [vmem:[%s196 + $0x60] sm:$0xff]
        %v212 = vld [vmem:[%s196 + $0x68] sm:$0xff]
        %v213 = vld [vmem:[%s196 + $0x70] sm:$0xff]
        %v214 = vld [vmem:[%s196 + $0x78] sm:$0xff]
        %v215 = vld [vmem:[%s1] sm:$0xff]
        %v216 = vld [vmem:[%s1 + $0x8] sm:$0xff]
        %v217 = vld [vmem:[%s1 + $0x10] sm:$0x1]
        %vm218 = vcmask 138240
        %v220 = vsel %vm218, %v199, 0
        %v223 = vsel %vm218, %v200, 0
        %v226 = vsel %vm218, %v201, 0
        %v229 = vsel %vm218, %v202, 0
        %v232 = vsel %vm218, %v203, 0
        %v235 = vsel %vm218, %v204, 0
        %v238 = vsel %vm218, %v205, 0
        %v241 = vsel %vm218, %v206, 0
        %v244 = vsel %vm218, %v207, 0
        %v247 = vsel %vm218, %v208, 0
        %v250 = vsel %vm218, %v209, 0
        %v253 = vsel %vm218, %v210, 0
        %v256 = vsel %vm218, %v211, 0
        %v259 = vsel %vm218, %v212, 0
        %v262 = vsel %vm218, %v213, 0
        %v265 = vsel %vm218, %v214, 0
        %vm267 = vcmask 1040384
        %v269 = vsel %vm267, %v217, 0
        %271 = vmatprep.subr.mxu0 0.0
        %272 = vmatpush1.msra.mxu0 0.0
        %273 = vmatprep.subr.mxu0 0.0
        %274 = vmatpush1.msra.mxu0 0.0
        %275 = vmatprep.subr.mxu0 0.0
        %276 = vmatpush1.msra.mxu0 0.0
        %277 = vmatprep.subr.mxu0 0.0
        %278 = vmatpush1.msra.mxu0 0.0
        %279 = vmatprep.subr.mxu0 0.0
        %280 = vmatpush1.msra.mxu0 0.0
        %281 = vmatprep.subr.mxu0 0.0
        %282 = vmatpush1.msra.mxu0 0.0
        %283 = vmatprep.subr.mxu0 0.0
        %284 = vmatpush1.msra.mxu0 0.0
        %285 = vmatprep.subr.mxu0 0.0
        %286 = vmatpush1.msra.mxu0 0.0
        %287 = vmatprep.subr.mxu0 0.0
        %288 = vmatpush1.msra.mxu0 0.0
        %289 = vmatprep.subr.mxu0 0.0
        %290 = vmatpush1.msra.mxu0 0.0
        %291 = vmatprep.subr.mxu0 0.0
        %292 = vmatpush1.msra.mxu0 0.0
        %293 = vmatprep.subr.mxu0 0.0
        %294 = vmatpush1.msra.mxu0 0.0
        %295 = vmatprep.subr.mxu0 0.0
        %296 = vmatpush1.msra.mxu0 0.0
        %297 = vmatprep.subr.mxu0 0.0
        %298 = vmatpush1.msra.mxu0 %v269
        %299 = vmatprep.subr.mxu0 0.0
        %300 = vmatpush1.msra.mxu0 %v216
        %301 = vmatprep.subr.mxu0 0.0
        %302 = vmatpush1.msra.mxu0 %v215
        %303 = vmatprep.subr.mxu0 0.0
        %304 = vmatpush2.msra.mxu0 0.0
        %305 = vmatprep.subr.mxu0 0.0
        %306 = vmatpush2.msra.mxu0 0.0
        %307 = vmatprep.subr.mxu0 0.0
        %308 = vmatpush2.msra.mxu0 0.0
        %309 = vmatprep.subr.mxu0 0.0
        %310 = vmatpush2.msra.mxu0 0.0
        %311 = vmatprep.subr.mxu0 0.0
        %312 = vmatpush2.msra.mxu0 0.0
        %313 = vmatprep.subr.mxu0 0.0
        %314 = vmatpush2.msra.mxu0 0.0
        %315 = vmatprep.subr.mxu0 0.0
        %316 = vmatpush2.msra.mxu0 0.0
        %317 = vmatprep.subr.mxu0 0.0
        %318 = vmatpush2.msra.mxu0 0.0
        %319 = vmatprep.subr.mxu0 0.0
        %320 = vmatpush2.msra.mxu0 0.0
        %321 = vmatprep.subr.mxu0 0.0
        %322 = vmatpush2.msra.mxu0 0.0
        %323 = vmatprep.subr.mxu0 0.0
        %324 = vmatpush2.msra.mxu0 0.0
        %325 = vmatprep.subr.mxu0 0.0
        %326 = vmatpush2.msra.mxu0 0.0
        %327 = vmatprep.subr.mxu0 0.0
        %328 = vmatpush2.msra.mxu0 0.0
        %329 = vmatprep.subr.mxu0 0.0
        %330 = vmatpush2.msra.mxu0 0.0
        %331 = vmatprep.subr.mxu0 0.0
        %332 = vmatpush2.msra.mxu0 0.0
        %333 = vmatprep.subr.mxu0 0.0
        %334 = vmatpush2.msra.mxu0 0.0
        %335 = vmatprep.mubr.f32.mxu0 0.0
        %336 = vmatmul.mubr.f32.gmra.mxu0 %v220
        %v337 = vpop.f32.mrf.mxu0
        %v338 = vadd.f32 0.0, %v337
        %v339 = vpop.f32.mrf.mxu0
        %340 = vmatprep.mubr.f32.mxu0 0.0
        %341 = vmatmul.mubr.f32.gmra.mxu0 %v223
        %v342 = vpop.f32.mrf.mxu0
        %v343 = vadd.f32 0.0, %v342
        %v344 = vpop.f32.mrf.mxu0
        %345 = vmatprep.mubr.f32.mxu0 0.0
        %346 = vmatmul.mubr.f32.gmra.mxu0 %v226
        %v347 = vpop.f32.mrf.mxu0
        %v348 = vadd.f32 0.0, %v347
        %v349 = vpop.f32.mrf.mxu0
        %350 = vmatprep.mubr.f32.mxu0 0.0
        %351 = vmatmul.mubr.f32.gmra.mxu0 %v229
        %v352 = vpop.f32.mrf.mxu0
        %v353 = vadd.f32 0.0, %v352
        %v354 = vpop.f32.mrf.mxu0
        %355 = vmatprep.mubr.f32.mxu0 0.0
        %356 = vmatmul.mubr.f32.gmra.mxu0 %v232
        %v357 = vpop.f32.mrf.mxu0
        %v358 = vadd.f32 0.0, %v357
        %v359 = vpop.f32.mrf.mxu0
        %360 = vmatprep.mubr.f32.mxu0 0.0
        %361 = vmatmul.mubr.f32.gmra.mxu0 %v235
        %v362 = vpop.f32.mrf.mxu0
        %v363 = vadd.f32 0.0, %v362
        %v364 = vpop.f32.mrf.mxu0
        %365 = vmatprep.mubr.f32.mxu0 0.0
        %366 = vmatmul.mubr.f32.gmra.mxu0 %v238
        %v367 = vpop.f32.mrf.mxu0
        %v368 = vadd.f32 0.0, %v367
        %v369 = vpop.f32.mrf.mxu0
        %370 = vmatprep.mubr.f32.mxu0 0.0
        %371 = vmatmul.mubr.f32.gmra.mxu0 %v241
        %v372 = vpop.f32.mrf.mxu0
        %v373 = vadd.f32 0.0, %v372
        %v374 = vpop.f32.mrf.mxu0
        %375 = vmatprep.mubr.f32.mxu0 0.0
        %376 = vmatmul.mubr.f32.gmra.mxu0 %v244
        %v377 = vpop.f32.mrf.mxu0
        %v378 = vadd.f32 0.0, %v377
        %v379 = vpop.f32.mrf.mxu0
        %380 = vmatprep.mubr.f32.mxu0 0.0
        %381 = vmatmul.mubr.f32.gmra.mxu0 %v247
        %v382 = vpop.f32.mrf.mxu0
        %v383 = vadd.f32 0.0, %v382
        %v384 = vpop.f32.mrf.mxu0
        %385 = vmatprep.mubr.f32.mxu0 0.0
        %386 = vmatmul.mubr.f32.gmra.mxu0 %v250
        %v387 = vpop.f32.mrf.mxu0
        %v388 = vadd.f32 0.0, %v387
        %v389 = vpop.f32.mrf.mxu0
        %390 = vmatprep.mubr.f32.mxu0 0.0
        %391 = vmatmul.mubr.f32.gmra.mxu0 %v253
        %v392 = vpop.f32.mrf.mxu0
        %v393 = vadd.f32 0.0, %v392
        %v394 = vpop.f32.mrf.mxu0
        %395 = vmatprep.mubr.f32.mxu0 0.0
        %396 = vmatmul.mubr.f32.gmra.mxu0 %v256
        %v397 = vpop.f32.mrf.mxu0
        %v398 = vadd.f32 0.0, %v397
        %v399 = vpop.f32.mrf.mxu0
        %400 = vmatprep.mubr.f32.mxu0 0.0
        %401 = vmatmul.mubr.f32.gmra.mxu0 %v259
        %v402 = vpop.f32.mrf.mxu0
        %v403 = vadd.f32 0.0, %v402
        %v404 = vpop.f32.mrf.mxu0
        %405 = vmatprep.mubr.f32.mxu0 0.0
        %406 = vmatmul.mubr.f32.gmra.mxu0 %v262
        %v407 = vpop.f32.mrf.mxu0
        %v408 = vadd.f32 0.0, %v407
        %v409 = vpop.f32.mrf.mxu0
        %410 = vmatprep.mubr.f32.mxu0 0.0
        %411 = vmatmul.mubr.f32.gmra.mxu0 %v265
        %v412 = vpop.f32.mrf.mxu0
        %v413 = vadd.f32 0.0, %v412
        %v414 = vpop.f32.mrf.mxu0
        %415 = vdwg.mxu0
        %v416 = vmax.f32 %v338, 0.0
        %v417 = vmax.f32 %v343, 0.0
        %v418 = vmax.f32 %v348, 0.0
        %v419 = vmax.f32 %v353, 0.0
        %v420 = vmax.f32 %v358, 0.0
        %v421 = vmax.f32 %v363, 0.0
        %v422 = vmax.f32 %v368, 0.0
        %v423 = vmax.f32 %v373, 0.0
        %v424 = vmax.f32 %v378, 0.0
        %v425 = vmax.f32 %v383, 0.0
        %v426 = vmax.f32 %v388, 0.0
        %v427 = vmax.f32 %v393, 0.0
        %v428 = vmax.f32 %v398, 0.0
        %v429 = vmax.f32 %v403, 0.0
        %v430 = vmax.f32 %v408, 0.0
        %v431 = vmax.f32 %v413, 0.0
        %v432 = vld [vmem:[%s2] sm:$0xff]
        %v433 = vld [vmem:[%s2 + $0x8] sm:$0xff]
        %v434 = vld [vmem:[%s2 + $0x10] sm:$0xff]
        %v435 = vld [vmem:[%s2 + $0x18] sm:$0xff]
        %v436 = vld [vmem:[%s2 + $0x20] sm:$0xff]
        %v437 = vld [vmem:[%s2 + $0x28] sm:$0xff]
        %v438 = vld [vmem:[%s2 + $0x30] sm:$0xff]
        %v439 = vld [vmem:[%s2 + $0x38] sm:$0xff]
        %v440 = vld [vmem:[%s2 + $0x40] sm:$0x1]
        %vm441 = vcmask 531456
        %v443 = vsel %vm441, %v416, 0
        %v446 = vsel %vm441, %v417, 0
        %v449 = vsel %vm441, %v418, 0
        %v452 = vsel %vm441, %v419, 0
        %v455 = vsel %vm441, %v420, 0
        %v458 = vsel %vm441, %v421, 0
        %v461 = vsel %vm441, %v422, 0
        %v464 = vsel %vm441, %v423, 0
        %v467 = vsel %vm441, %v424, 0
        %v470 = vsel %vm441, %v425, 0
        %v473 = vsel %vm441, %v426, 0
        %v476 = vsel %vm441, %v427, 0
        %v479 = vsel %vm441, %v428, 0
        %v482 = vsel %vm441, %v429, 0
        %v485 = vsel %vm441, %v430, 0
        %v488 = vsel %vm441, %v431, 0
        %v491 = vsel %vm267, %v440, 0
        %493 = vmatprep.subr.mxu0 0.0
        %494 = vmatpush1.msra.mxu0 0.0
        %495 = vmatprep.subr.mxu0 0.0
        %496 = vmatpush1.msra.mxu0 0.0
        %497 = vmatprep.subr.mxu0 0.0
        %498 = vmatpush1.msra.mxu0 0.0
        %499 = vmatprep.subr.mxu0 0.0
        %500 = vmatpush1.msra.mxu0 0.0
        %501 = vmatprep.subr.mxu0 0.0
        %502 = vmatpush1.msra.mxu0 0.0
        %503 = vmatprep.subr.mxu0 0.0
        %504 = vmatpush1.msra.mxu0 0.0
        %505 = vmatprep.subr.mxu0 0.0
        %506 = vmatpush1.msra.mxu0 0.0
        %507 = vmatprep.subr.mxu0 0.0
        %508 = vmatpush1.msra.mxu0 %v491
        %509 = vmatprep.subr.mxu0 0.0
        %510 = vmatpush1.msra.mxu0 %v439
        %511 = vmatprep.subr.mxu0 0.0
        %512 = vmatpush1.msra.mxu0 %v438
        %513 = vmatprep.subr.mxu0 0.0
        %514 = vmatpush1.msra.mxu0 %v437
        %515 = vmatprep.subr.mxu0 0.0
        %516 = vmatpush1.msra.mxu0 %v436
        %517 = vmatprep.subr.mxu0 0.0
        %518 = vmatpush1.msra.mxu0 %v435
        %519 = vmatprep.subr.mxu0 0.0
        %520 = vmatpush1.msra.mxu0 %v434
        %521 = vmatprep.subr.mxu0 0.0
        %522 = vmatpush1.msra.mxu0 %v433
        %523 = vmatprep.subr.mxu0 0.0
        %524 = vmatpush1.msra.mxu0 %v432
        %525 = vmatprep.subr.mxu0 0.0
        %526 = vmatpush2.msra.mxu0 0.0
        %527 = vmatprep.subr.mxu0 0.0
        %528 = vmatpush2.msra.mxu0 0.0
        %529 = vmatprep.subr.mxu0 0.0
        %530 = vmatpush2.msra.mxu0 0.0
        %531 = vmatprep.subr.mxu0 0.0
        %532 = vmatpush2.msra.mxu0 0.0
        %533 = vmatprep.subr.mxu0 0.0
        %534 = vmatpush2.msra.mxu0 0.0
        %535 = vmatprep.subr.mxu0 0.0
        %536 = vmatpush2.msra.mxu0 0.0
        %537 = vmatprep.subr.mxu0 0.0
        %538 = vmatpush2.msra.mxu0 0.0
        %539 = vmatprep.subr.mxu0 0.0
        %540 = vmatpush2.msra.mxu0 0.0
        %541 = vmatprep.subr.mxu0 0.0
        %542 = vmatpush2.msra.mxu0 0.0
        %543 = vmatprep.subr.mxu0 0.0
        %544 = vmatpush2.msra.mxu0 0.0
        %545 = vmatprep.subr.mxu0 0.0
        %546 = vmatpush2.msra.mxu0 0.0
        %547 = vmatprep.subr.mxu0 0.0
        %548 = vmatpush2.msra.mxu0 0.0
        %549 = vmatprep.subr.mxu0 0.0
        %550 = vmatpush2.msra.mxu0 0.0
        %551 = vmatprep.subr.mxu0 0.0
        %552 = vmatpush2.msra.mxu0 0.0
        %553 = vmatprep.subr.mxu0 0.0
        %554 = vmatpush2.msra.mxu0 0.0
        %555 = vmatprep.subr.mxu0 0.0
        %556 = vmatpush2.msra.mxu0 0.0
        %557 = vmatprep.mubr.f32.mxu0 0.0
        %558 = vmatmul.mubr.f32.gmra.mxu0 %v443
        %v559 = vpop.f32.mrf.mxu0
        %v560 = vadd.f32 0.0, %v559
        %v561 = vpop.f32.mrf.mxu0
        %562 = vmatprep.mubr.f32.mxu0 0.0
        %563 = vmatmul.mubr.f32.gmra.mxu0 %v446
        %v564 = vpop.f32.mrf.mxu0
        %v565 = vadd.f32 0.0, %v564
        %v566 = vpop.f32.mrf.mxu0
        %567 = vmatprep.mubr.f32.mxu0 0.0
        %568 = vmatmul.mubr.f32.gmra.mxu0 %v449
        %v569 = vpop.f32.mrf.mxu0
        %v570 = vadd.f32 0.0, %v569
        %v571 = vpop.f32.mrf.mxu0
        %572 = vmatprep.mubr.f32.mxu0 0.0
        %573 = vmatmul.mubr.f32.gmra.mxu0 %v452
        %v574 = vpop.f32.mrf.mxu0
        %v575 = vadd.f32 0.0, %v574
        %v576 = vpop.f32.mrf.mxu0
        %577 = vmatprep.mubr.f32.mxu0 0.0
        %578 = vmatmul.mubr.f32.gmra.mxu0 %v455
        %v579 = vpop.f32.mrf.mxu0
        %v580 = vadd.f32 0.0, %v579
        %v581 = vpop.f32.mrf.mxu0
        %582 = vmatprep.mubr.f32.mxu0 0.0
        %583 = vmatmul.mubr.f32.gmra.mxu0 %v458
        %v584 = vpop.f32.mrf.mxu0
        %v585 = vadd.f32 0.0, %v584
        %v586 = vpop.f32.mrf.mxu0
        %587 = vmatprep.mubr.f32.mxu0 0.0
        %588 = vmatmul.mubr.f32.gmra.mxu0 %v461
        %v589 = vpop.f32.mrf.mxu0
        %v590 = vadd.f32 0.0, %v589
        %v591 = vpop.f32.mrf.mxu0
        %592 = vmatprep.mubr.f32.mxu0 0.0
        %593 = vmatmul.mubr.f32.gmra.mxu0 %v464
        %v594 = vpop.f32.mrf.mxu0
        %v595 = vadd.f32 0.0, %v594
        %v596 = vpop.f32.mrf.mxu0
        %597 = vmatprep.mubr.f32.mxu0 0.0
        %598 = vmatmul.mubr.f32.gmra.mxu0 %v467
        %v599 = vpop.f32.mrf.mxu0
        %v600 = vadd.f32 0.0, %v599
        %v601 = vpop.f32.mrf.mxu0
        %602 = vmatprep.mubr.f32.mxu0 0.0
        %603 = vmatmul.mubr.f32.gmra.mxu0 %v470
        %v604 = vpop.f32.mrf.mxu0
        %v605 = vadd.f32 0.0, %v604
        %v606 = vpop.f32.mrf.mxu0
        %607 = vmatprep.mubr.f32.mxu0 0.0
        %608 = vmatmul.mubr.f32.gmra.mxu0 %v473
        %v609 = vpop.f32.mrf.mxu0
        %v610 = vadd.f32 0.0, %v609
        %v611 = vpop.f32.mrf.mxu0
        %612 = vmatprep.mubr.f32.mxu0 0.0
        %613 = vmatmul.mubr.f32.gmra.mxu0 %v476
        %v614 = vpop.f32.mrf.mxu0
        %v615 = vadd.f32 0.0, %v614
        %v616 = vpop.f32.mrf.mxu0
        %617 = vmatprep.mubr.f32.mxu0 0.0
        %618 = vmatmul.mubr.f32.gmra.mxu0 %v479
        %v619 = vpop.f32.mrf.mxu0
        %v620 = vadd.f32 0.0, %v619
        %v621 = vpop.f32.mrf.mxu0
        %622 = vmatprep.mubr.f32.mxu0 0.0
        %623 = vmatmul.mubr.f32.gmra.mxu0 %v482
        %v624 = vpop.f32.mrf.mxu0
        %v625 = vadd.f32 0.0, %v624
        %v626 = vpop.f32.mrf.mxu0
        %627 = vmatprep.mubr.f32.mxu0 0.0
        %628 = vmatmul.mubr.f32.gmra.mxu0 %v485
        %v629 = vpop.f32.mrf.mxu0
        %v630 = vadd.f32 0.0, %v629
        %v631 = vpop.f32.mrf.mxu0
        %632 = vmatprep.mubr.f32.mxu0 0.0
        %633 = vmatmul.mubr.f32.gmra.mxu0 %v488
        %v634 = vpop.f32.mrf.mxu0
        %v635 = vadd.f32 0.0, %v634
        %v636 = vpop.f32.mrf.mxu0
        %637 = vdwg.mxu0
        %v638 = vmax.f32 %v560, 0.0
        %v639 = vmax.f32 %v565, 0.0
        %v640 = vmax.f32 %v570, 0.0
        %v641 = vmax.f32 %v575, 0.0
        %v642 = vmax.f32 %v580, 0.0
        %v643 = vmax.f32 %v585, 0.0
        %v644 = vmax.f32 %v590, 0.0
        %v645 = vmax.f32 %v595, 0.0
        %v646 = vmax.f32 %v600, 0.0
        %v647 = vmax.f32 %v605, 0.0
        %v648 = vmax.f32 %v610, 0.0
        %v649 = vmax.f32 %v615, 0.0
        %v650 = vmax.f32 %v620, 0.0
        %v651 = vmax.f32 %v625, 0.0
        %v652 = vmax.f32 %v630, 0.0
        %v653 = vmax.f32 %v635, 0.0
        %v654 = vld [vmem:[%s3] sm:$0xff]
        %v655 = vld [vmem:[%s3 + $0x8] sm:$0xff]
        %v656 = vld [vmem:[%s3 + $0x10] sm:$0xff]
        %v657 = vld [vmem:[%s3 + $0x18] sm:$0xff]
        %v658 = vld [vmem:[%s3 + $0x20] sm:$0xff]
        %v659 = vld [vmem:[%s3 + $0x28] sm:$0xff]
        %v660 = vld [vmem:[%s3 + $0x30] sm:$0xff]
        %v661 = vld [vmem:[%s3 + $0x38] sm:$0xff]
        %v662 = vld [vmem:[%s3 + $0x40] sm:$0x1]
        %v664 = vsel %vm441, %v638, 0
        %v667 = vsel %vm441, %v639, 0
        %v670 = vsel %vm441, %v640, 0
        %v673 = vsel %vm441, %v641, 0
        %v676 = vsel %vm441, %v642, 0
        %v679 = vsel %vm441, %v643, 0
        %v682 = vsel %vm441, %v644, 0
        %v685 = vsel %vm441, %v645, 0
        %v688 = vsel %vm441, %v646, 0
        %v691 = vsel %vm441, %v647, 0
        %v694 = vsel %vm441, %v648, 0
        %v697 = vsel %vm441, %v649, 0
        %v700 = vsel %vm441, %v650, 0
        %v703 = vsel %vm441, %v651, 0
        %v706 = vsel %vm441, %v652, 0
        %v709 = vsel %vm441, %v653, 0
        %v712 = vsel %vm267, %v662, 0
        %714 = vmatprep.subr.mxu0 0.0
        %715 = vmatpush1.msra.mxu0 0.0
        %716 = vmatprep.subr.mxu0 0.0
        %717 = vmatpush1.msra.mxu0 0.0
        %718 = vmatprep.subr.mxu0 0.0
        %719 = vmatpush1.msra.mxu0 0.0
        %720 = vmatprep.subr.mxu0 0.0
        %721 = vmatpush1.msra.mxu0 0.0
        %722 = vmatprep.subr.mxu0 0.0
        %723 = vmatpush1.msra.mxu0 0.0
        %724 = vmatprep.subr.mxu0 0.0
        %725 = vmatpush1.msra.mxu0 0.0
        %726 = vmatprep.subr.mxu0 0.0
        %727 = vmatpush1.msra.mxu0 0.0
        %728 = vmatprep.subr.mxu0 0.0
        %729 = vmatpush1.msra.mxu0 %v712
        %730 = vmatprep.subr.mxu0 0.0
        %731 = vmatpush1.msra.mxu0 %v661
        %732 = vmatprep.subr.mxu0 0.0
        %733 = vmatpush1.msra.mxu0 %v660
        %734 = vmatprep.subr.mxu0 0.0
        %735 = vmatpush1.msra.mxu0 %v659
        %736 = vmatprep.subr.mxu0 0.0
        %737 = vmatpush1.msra.mxu0 %v658
        %738 = vmatprep.subr.mxu0 0.0
        %739 = vmatpush1.msra.mxu0 %v657
        %740 = vmatprep.subr.mxu0 0.0
        %741 = vmatpush1.msra.mxu0 %v656
        %742 = vmatprep.subr.mxu0 0.0
        %743 = vmatpush1.msra.mxu0 %v655
        %744 = vmatprep.subr.mxu0 0.0
        %745 = vmatpush1.msra.mxu0 %v654
        %746 = vmatprep.subr.mxu0 0.0
        %747 = vmatpush2.msra.mxu0 0.0
        %748 = vmatprep.subr.mxu0 0.0
        %749 = vmatpush2.msra.mxu0 0.0
        %750 = vmatprep.subr.mxu0 0.0
        %751 = vmatpush2.msra.mxu0 0.0
        %752 = vmatprep.subr.mxu0 0.0
        %753 = vmatpush2.msra.mxu0 0.0
        %754 = vmatprep.subr.mxu0 0.0
        %755 = vmatpush2.msra.mxu0 0.0
        %756 = vmatprep.subr.mxu0 0.0
        %757 = vmatpush2.msra.mxu0 0.0
        %758 = vmatprep.subr.mxu0 0.0
        %759 = vmatpush2.msra.mxu0 0.0
        %760 = vmatprep.subr.mxu0 0.0
        %761 = vmatpush2.msra.mxu0 0.0
        %762 = vmatprep.subr.mxu0 0.0
        %763 = vmatpush2.msra.mxu0 0.0
        %764 = vmatprep.subr.mxu0 0.0
        %765 = vmatpush2.msra.mxu0 0.0
        %766 = vmatprep.subr.mxu0 0.0
        %767 = vmatpush2.msra.mxu0 0.0
        %768 = vmatprep.subr.mxu0 0.0
        %769 = vmatpush2.msra.mxu0 0.0
        %770 = vmatprep.subr.mxu0 0.0
        %771 = vmatpush2.msra.mxu0 0.0
        %772 = vmatprep.subr.mxu0 0.0
        %773 = vmatpush2.msra.mxu0 0.0
        %774 = vmatprep.subr.mxu0 0.0
        %775 = vmatpush2.msra.mxu0 0.0
        %776 = vmatprep.subr.mxu0 0.0
        %777 = vmatpush2.msra.mxu0 0.0
        %778 = vmatprep.mubr.f32.mxu0 0.0
        %779 = vmatmul.mubr.f32.gmra.mxu0 %v664
        %v780 = vpop.f32.mrf.mxu0
        %v781 = vadd.f32 0.0, %v780
        %v782 = vpop.f32.mrf.mxu0
        %783 = vmatprep.mubr.f32.mxu0 0.0
        %784 = vmatmul.mubr.f32.gmra.mxu0 %v667
        %v785 = vpop.f32.mrf.mxu0
        %v786 = vadd.f32 0.0, %v785
        %v787 = vpop.f32.mrf.mxu0
        %788 = vmatprep.mubr.f32.mxu0 0.0
        %789 = vmatmul.mubr.f32.gmra.mxu0 %v670
        %v790 = vpop.f32.mrf.mxu0
        %v791 = vadd.f32 0.0, %v790
        %v792 = vpop.f32.mrf.mxu0
        %793 = vmatprep.mubr.f32.mxu0 0.0
        %794 = vmatmul.mubr.f32.gmra.mxu0 %v673
        %v795 = vpop.f32.mrf.mxu0
        %v796 = vadd.f32 0.0, %v795
        %v797 = vpop.f32.mrf.mxu0
        %798 = vmatprep.mubr.f32.mxu0 0.0
        %799 = vmatmul.mubr.f32.gmra.mxu0 %v676
        %v800 = vpop.f32.mrf.mxu0
        %v801 = vadd.f32 0.0, %v800
        %v802 = vpop.f32.mrf.mxu0
        %803 = vmatprep.mubr.f32.mxu0 0.0
        %804 = vmatmul.mubr.f32.gmra.mxu0 %v679
        %v805 = vpop.f32.mrf.mxu0
        %v806 = vadd.f32 0.0, %v805
        %v807 = vpop.f32.mrf.mxu0
        %808 = vmatprep.mubr.f32.mxu0 0.0
        %809 = vmatmul.mubr.f32.gmra.mxu0 %v682
        %v810 = vpop.f32.mrf.mxu0
        %v811 = vadd.f32 0.0, %v810
        %v812 = vpop.f32.mrf.mxu0
        %813 = vmatprep.mubr.f32.mxu0 0.0
        %814 = vmatmul.mubr.f32.gmra.mxu0 %v685
        %v815 = vpop.f32.mrf.mxu0
        %v816 = vadd.f32 0.0, %v815
        %v817 = vpop.f32.mrf.mxu0
        %818 = vmatprep.mubr.f32.mxu0 0.0
        %819 = vmatmul.mubr.f32.gmra.mxu0 %v688
        %v820 = vpop.f32.mrf.mxu0
        %v821 = vadd.f32 0.0, %v820
        %v822 = vpop.f32.mrf.mxu0
        %823 = vmatprep.mubr.f32.mxu0 0.0
        %824 = vmatmul.mubr.f32.gmra.mxu0 %v691
        %v825 = vpop.f32.mrf.mxu0
        %v826 = vadd.f32 0.0, %v825
        %v827 = vpop.f32.mrf.mxu0
        %828 = vmatprep.mubr.f32.mxu0 0.0
        %829 = vmatmul.mubr.f32.gmra.mxu0 %v694
        %v830 = vpop.f32.mrf.mxu0
        %v831 = vadd.f32 0.0, %v830
        %v832 = vpop.f32.mrf.mxu0
        %833 = vmatprep.mubr.f32.mxu0 0.0
        %834 = vmatmul.mubr.f32.gmra.mxu0 %v697
        %v835 = vpop.f32.mrf.mxu0
        %v836 = vadd.f32 0.0, %v835
        %v837 = vpop.f32.mrf.mxu0
        %838 = vmatprep.mubr.f32.mxu0 0.0
        %839 = vmatmul.mubr.f32.gmra.mxu0 %v700
        %v840 = vpop.f32.mrf.mxu0
        %v841 = vadd.f32 0.0, %v840
        %v842 = vpop.f32.mrf.mxu0
        %843 = vmatprep.mubr.f32.mxu0 0.0
        %844 = vmatmul.mubr.f32.gmra.mxu0 %v703
        %v845 = vpop.f32.mrf.mxu0
        %v846 = vadd.f32 0.0, %v845
        %v847 = vpop.f32.mrf.mxu0
        %848 = vmatprep.mubr.f32.mxu0 0.0
        %849 = vmatmul.mubr.f32.gmra.mxu0 %v706
        %v850 = vpop.f32.mrf.mxu0
        %v851 = vadd.f32 0.0, %v850
        %v852 = vpop.f32.mrf.mxu0
        %853 = vmatprep.mubr.f32.mxu0 0.0
        %854 = vmatmul.mubr.f32.gmra.mxu0 %v709
        %v855 = vpop.f32.mrf.mxu0
        %v856 = vadd.f32 0.0, %v855
        %v857 = vpop.f32.mrf.mxu0
        %858 = vdwg.mxu0
        %v859 = vlaneseq
        %v860 = vand.u32 %v859, 127
        %vm861 = vcmp.ge.s32.totalorder %v860, 1
        %vm862 = vcmp.le.s32.totalorder %v860, 8
        %vm863 = vmand %vm861, %vm862
        %v864 = vsel %vm863, %v781, -inf
        %v865 = vsel %vm863, %v786, -inf
        %v866 = vsel %vm863, %v791, -inf
        %v867 = vsel %vm863, %v796, -inf
        %v868 = vsel %vm863, %v801, -inf
        %v869 = vsel %vm863, %v806, -inf
        %v870 = vsel %vm863, %v811, -inf
        %v871 = vsel %vm863, %v816, -inf
        %v872 = vsel %vm863, %v821, -inf
        %v873 = vsel %vm863, %v826, -inf
        %v874 = vsel %vm863, %v831, -inf
        %v875 = vsel %vm863, %v836, -inf
        %v876 = vsel %vm863, %v841, -inf
        %v877 = vsel %vm863, %v846, -inf
        %v878 = vsel %vm863, %v851, -inf
        %v879 = vsel %vm863, %v856, -inf
        %880 = vmax.xlane.f32.xlu0 %v864
        %v881 = vpop.xlane.xlu0 %880
        %882 = vmax.xlane.f32.xlu0 %v865
        %v883 = vpop.xlane.xlu0 %882
        %884 = vmax.xlane.f32.xlu0 %v866
        %v885 = vpop.xlane.xlu0 %884
        %886 = vmax.xlane.f32.xlu0 %v867
        %v887 = vpop.xlane.xlu0 %886
        %888 = vmax.xlane.f32.xlu0 %v868
        %v889 = vpop.xlane.xlu0 %888
        %890 = vmax.xlane.f32.xlu0 %v869
        %v891 = vpop.xlane.xlu0 %890
        %892 = vmax.xlane.f32.xlu0 %v870
        %v893 = vpop.xlane.xlu0 %892
        %894 = vmax.xlane.f32.xlu0 %v871
        %v895 = vpop.xlane.xlu0 %894
        %896 = vmax.xlane.f32.xlu0 %v872
        %v897 = vpop.xlane.xlu0 %896
        %898 = vmax.xlane.f32.xlu0 %v873
        %v899 = vpop.xlane.xlu0 %898
        %900 = vmax.xlane.f32.xlu0 %v874
        %v901 = vpop.xlane.xlu0 %900
        %902 = vmax.xlane.f32.xlu0 %v875
        %v903 = vpop.xlane.xlu0 %902
        %904 = vmax.xlane.f32.xlu0 %v876
        %v905 = vpop.xlane.xlu0 %904
        %906 = vmax.xlane.f32.xlu0 %v877
        %v907 = vpop.xlane.xlu0 %906
        %908 = vmax.xlane.f32.xlu0 %v878
        %v909 = vpop.xlane.xlu0 %908
        %910 = vmax.xlane.f32.xlu0 %v879
        %v911 = vpop.xlane.xlu0 %910
        %v912 = vsub.f32 %v781, %v881
        %v913 = vsub.f32 %v786, %v883
        %v914 = vsub.f32 %v791, %v885
        %v915 = vsub.f32 %v796, %v887
        %v916 = vsub.f32 %v801, %v889
        %v917 = vsub.f32 %v806, %v891
        %v918 = vsub.f32 %v811, %v893
        %v919 = vsub.f32 %v816, %v895
        %v920 = vsub.f32 %v821, %v897
        %v921 = vsub.f32 %v826, %v899
        %v922 = vsub.f32 %v831, %v901
        %v923 = vsub.f32 %v836, %v903
        %v924 = vsub.f32 %v841, %v905
        %v925 = vsub.f32 %v846, %v907
        %v926 = vsub.f32 %v851, %v909
        %v927 = vsub.f32 %v856, %v911
        %v928 = vmul.f32 %v912, 1.442695
        %v929 = vpow.pop %v928
        %v930 = vmul.f32 %v913, 1.442695
        %v931 = vpow.pop %v930
        %v932 = vmul.f32 %v914, 1.442695
        %v933 = vpow.pop %v932
        %v934 = vmul.f32 %v915, 1.442695
        %v935 = vpow.pop %v934
        %v936 = vmul.f32 %v916, 1.442695
        %v937 = vpow.pop %v936
        %v938 = vmul.f32 %v917, 1.442695
        %v939 = vpow.pop %v938
        %v940 = vmul.f32 %v918, 1.442695
        %v941 = vpow.pop %v940
        %v942 = vmul.f32 %v919, 1.442695
        %v943 = vpow.pop %v942
        %v944 = vmul.f32 %v920, 1.442695
        %v945 = vpow.pop %v944
        %v946 = vmul.f32 %v921, 1.442695
        %v947 = vpow.pop %v946
        %v948 = vmul.f32 %v922, 1.442695
        %v949 = vpow.pop %v948
        %v950 = vmul.f32 %v923, 1.442695
        %v951 = vpow.pop %v950
        %v952 = vmul.f32 %v924, 1.442695
        %v953 = vpow.pop %v952
        %v954 = vmul.f32 %v925, 1.442695
        %v955 = vpow.pop %v954
        %v956 = vmul.f32 %v926, 1.442695
        %v957 = vpow.pop %v956
        %v958 = vmul.f32 %v927, 1.442695
        %v959 = vpow.pop %v958
        %v960 = vsel %vm863, %v929, 0.0
        %v961 = vsel %vm863, %v931, 0.0
        %v962 = vsel %vm863, %v933, 0.0
        %v963 = vsel %vm863, %v935, 0.0
        %v964 = vsel %vm863, %v937, 0.0
        %v965 = vsel %vm863, %v939, 0.0
        %v966 = vsel %vm863, %v941, 0.0
        %v967 = vsel %vm863, %v943, 0.0
        %v968 = vsel %vm863, %v945, 0.0
        %v969 = vsel %vm863, %v947, 0.0
        %v970 = vsel %vm863, %v949, 0.0
        %v971 = vsel %vm863, %v951, 0.0
        %v972 = vsel %vm863, %v953, 0.0
        %v973 = vsel %vm863, %v955, 0.0
        %v974 = vsel %vm863, %v957, 0.0
        %v975 = vsel %vm863, %v959, 0.0
        %976 = vadd.xlane.f32.xlu0 %v960
        %v977 = vpop.xlane.xlu0 %976
        %978 = vadd.xlane.f32.xlu0 %v961
        %v979 = vpop.xlane.xlu0 %978
        %980 = vadd.xlane.f32.xlu0 %v962
        %v981 = vpop.xlane.xlu0 %980
        %982 = vadd.xlane.f32.xlu0 %v963
        %v983 = vpop.xlane.xlu0 %982
        %984 = vadd.xlane.f32.xlu0 %v964
        %v985 = vpop.xlane.xlu0 %984
        %986 = vadd.xlane.f32.xlu0 %v965
        %v987 = vpop.xlane.xlu0 %986
        %988 = vadd.xlane.f32.xlu0 %v966
        %v989 = vpop.xlane.xlu0 %988
        %990 = vadd.xlane.f32.xlu0 %v967
        %v991 = vpop.xlane.xlu0 %990
        %992 = vadd.xlane.f32.xlu0 %v968
        %v993 = vpop.xlane.xlu0 %992
        %994 = vadd.xlane.f32.xlu0 %v969
        %v995 = vpop.xlane.xlu0 %994
        %996 = vadd.xlane.f32.xlu0 %v970
        %v997 = vpop.xlane.xlu0 %996
        %998 = vadd.xlane.f32.xlu0 %v971
        %v999 = vpop.xlane.xlu0 %998
        %1000 = vadd.xlane.f32.xlu0 %v972
        %v1001 = vpop.xlane.xlu0 %1000
        %1002 = vadd.xlane.f32.xlu0 %v973
        %v1003 = vpop.xlane.xlu0 %1002
        %1004 = vadd.xlane.f32.xlu0 %v974
        %v1005 = vpop.xlane.xlu0 %1004
        %1006 = vadd.xlane.f32.xlu0 %v975
        %v1007 = vpop.xlane.xlu0 %1006
        %v1008 = vrcp.pop %v977
        %v1009 = vmul.f32 %v960, %v1008
        %v1010 = vrcp.pop %v979
        %v1011 = vmul.f32 %v961, %v1010
        %v1012 = vrcp.pop %v981
        %v1013 = vmul.f32 %v962, %v1012
        %v1014 = vrcp.pop %v983
        %v1015 = vmul.f32 %v963, %v1014
        %v1016 = vrcp.pop %v985
        %v1017 = vmul.f32 %v964, %v1016
        %v1018 = vrcp.pop %v987
        %v1019 = vmul.f32 %v965, %v1018
        %v1020 = vrcp.pop %v989
        %v1021 = vmul.f32 %v966, %v1020
        %v1022 = vrcp.pop %v991
        %v1023 = vmul.f32 %v967, %v1022
        %v1024 = vrcp.pop %v993
        %v1025 = vmul.f32 %v968, %v1024
        %v1026 = vrcp.pop %v995
        %v1027 = vmul.f32 %v969, %v1026
        %v1028 = vrcp.pop %v997
        %v1029 = vmul.f32 %v970, %v1028
        %v1030 = vrcp.pop %v999
        %v1031 = vmul.f32 %v971, %v1030
        %v1032 = vrcp.pop %v1001
        %v1033 = vmul.f32 %v972, %v1032
        %v1034 = vrcp.pop %v1003
        %v1035 = vmul.f32 %v973, %v1034
        %v1036 = vrcp.pop %v1005
        %v1037 = vmul.f32 %v974, %v1036
        %v1038 = vrcp.pop %v1007
        %v1039 = vmul.f32 %v975, %v1038
        %vm1040 = vcmp.eq.s32.totalorder %v860, 0
        %v1041 = vsel %vm1040, %v781, %v1009
        %v1042 = vsel %vm1040, %v786, %v1011
        %v1043 = vsel %vm1040, %v791, %v1013
        %v1044 = vsel %vm1040, %v796, %v1015
        %v1045 = vsel %vm1040, %v801, %v1017
        %v1046 = vsel %vm1040, %v806, %v1019
        %v1047 = vsel %vm1040, %v811, %v1021
        %v1048 = vsel %vm1040, %v816, %v1023
        %v1049 = vsel %vm1040, %v821, %v1025
        %v1050 = vsel %vm1040, %v826, %v1027
        %v1051 = vsel %vm1040, %v831, %v1029
        %v1052 = vsel %vm1040, %v836, %v1031
        %v1053 = vsel %vm1040, %v841, %v1033
        %v1054 = vsel %vm1040, %v846, %v1035
        %v1055 = vsel %vm1040, %v851, %v1037
        %v1056 = vsel %vm1040, %v856, %v1039
        %1057 = vst [vmem:[%s191] sm:$0xff] %v1041
        %1058 = vst [vmem:[%s191 + $0x8] sm:$0xff] %v1042
        %1059 = vst [vmem:[%s191 + $0x10] sm:$0xff] %v1043
        %1060 = vst [vmem:[%s191 + $0x18] sm:$0xff] %v1044
        %1061 = vst [vmem:[%s191 + $0x20] sm:$0xff] %v1045
        %1062 = vst [vmem:[%s191 + $0x28] sm:$0xff] %v1046
        %1063 = vst [vmem:[%s191 + $0x30] sm:$0xff] %v1047
        %1064 = vst [vmem:[%s191 + $0x38] sm:$0xff] %v1048
        %1065 = vst [vmem:[%s191 + $0x40] sm:$0xff] %v1049
        %1066 = vst [vmem:[%s191 + $0x48] sm:$0xff] %v1050
        %1067 = vst [vmem:[%s191 + $0x50] sm:$0xff] %v1051
        %1068 = vst [vmem:[%s191 + $0x58] sm:$0xff] %v1052
        %1069 = vst [vmem:[%s191 + $0x60] sm:$0xff] %v1053
        %1070 = vst [vmem:[%s191 + $0x68] sm:$0xff] %v1054
        %1071 = vst [vmem:[%s191 + $0x70] sm:$0xff] %v1055
        %1072 = vst [vmem:[%s191 + $0x78] sm:$0xff] %v1056
        %s1073 = sand.u32 %s115, 1
        %s1074 = scalar_lea.sflag [#allocation3], %s1073
        %s1075 = sand.u32 %s115, 1
        %s1076 = smul.addr %s1075, 128
        %s1077 = scalar_lea.vmem [#allocation2], %s1076
        // Predicated region
        $region37: #{tpu_custom_call.1} parent=35 // pred_check
          %p1078 = pneg %p125
        $region38: #{tpu_custom_call.1} parent=35 // pred_check_branch
          %1080 = sbr.rel (%p1078) target = $region40
        $region39: #{tpu_custom_call.1} parent=35 // pred_region
          %s1081 = smul.u32 16, %s18
          %s1083 = ssub.s32 2048, 2048
          %1084 = vsyncadd %s1074, %s1083
          %s1085 = smul.addr %s1081, 128
          %s1086 = scalar_lea.hbm %s4, %s1085
          %s1087 = sshll.u32 %s1077, 4
          %s1088 = int_to_ptr.vmem [resolvable:$true] %s1087
          %1093 = dma.vmem_to_hbm [thread:$0]  %s1088, 2048, %s1086, %s1074, 128, 128, 8
        $region40: #{tpu_custom_call.1} parent=35 // pred_fallthru
          _
      $region36: #{tpu_custom_call.1} parent=5 // pred_fallthru
        _
      %p1094 = scmp.le.s32.totalorder 2, %s13
      // Predicated region
      $region41: #{tpu_custom_call.1} parent=5 // pred_check
        %p1095 = pneg %p1094
      $region42: #{tpu_custom_call.1} parent=5 // pred_check_branch
        %1097 = sbr.rel (%p1095) target = $region44
      $region43: #{tpu_custom_call.1} parent=5 // pred_region
        %s1098 = ssub.s32 %s13, 2
        // Predicated region
        $region45: #{tpu_custom_call.1} parent=43 // pred_check
          %p1099 = pneg %p131
        $region46: #{tpu_custom_call.1} parent=43 // pred_check_branch
          %1101 = sbr.rel (%p1099) target = $region48
        $region47: #{tpu_custom_call.1} parent=43 // pred_region
          %s1102 = sand.u32 %s116, 1
          %s1103 = scalar_lea.sflag [#allocation3], %s1102
          %s1104 = sand.u32 %s116, 1
          %s1105 = smul.addr %s1104, 128
          %s1106 = scalar_lea.vmem [#allocation2], %s1105
          %1107 = dma.done %s1103, 2048
        $region48: #{tpu_custom_call.1} parent=43 // pred_fallthru
          _
      $region44: #{tpu_custom_call.1} parent=5 // pred_fallthru
        _
    $region6: #{tpu_custom_call.1} parent=1 // loop_footer
      %s17 = sadd.s32 1, %s13
    $region7: #{tpu_custom_call.1} parent=1 // loop_footer_branch
      %12 = sbr.rel target = $region3
    $region8: #{tpu_custom_call.1} parent=1 // loop_exit
      _
    %1108 = vsyncpa [#allocation3], 1
    %s1109 = scalar_lea.sflag [#allocation3], 1
    %1110 = vsyncpa %s1109, 1

</llo_original>
